<compile_context>
chip_gen: v6e
topology: v6e:2x2x1
jax: 0.10.0
libtpu: 0.0.40
codegen_flags: <defaults>
</compile_context>

<pallas_src>
import functools

import jax
import jax.numpy as jnp
from jax.experimental import pallas as pl
from jax.experimental.pallas import tpu as pltpu


def _hinge_loss_kernel(pos_ref, neg_ref, out_ref, acc_ref, *, inv_total):
    i = pl.program_id(0)
    j = pl.program_id(1)

    # Zero the vector accumulator on the first grid step.
    @pl.when((i == 0) & (j == 0))
    def _():
        acc_ref[...] = jnp.zeros_like(acc_ref)

    # Hot path: native-dtype load, upcast in-register, elementwise hinge (VPU),
    # then fold the (tm, td) tile into the (8, td) accumulator with vreg adds
    # (pure sublane-group split -> no cross-lane work in the steady state).
    pos = pos_ref[...].astype(jnp.float32)
    neg = neg_ref[...].astype(jnp.float32)
    hinge = jnp.maximum(pos - neg + 1.0, 0.0)
    tm, td = hinge.shape
    acc_ref[...] += jnp.sum(hinge.reshape(tm // 8, 8, td), axis=0)

    # Finalize: single cross-lane/sublane reduction + mean on the last step.
    @pl.when((i == pl.num_programs(0) - 1) & (j == pl.num_programs(1) - 1))
    def _():
        total = jnp.sum(acc_ref[...], keepdims=True)
        out_ref[...] = total * jnp.float32(inv_total)


def _round_up(x, m):
    return ((x + m - 1) // m) * m


def _pick_td(D, max_td=2048):
    """Largest 128-multiple divisor of D that is <= max_td (else full D)."""
    if D % 128 != 0 or D <= max_td:
        return D
    best = D
    for td in range(128, max_td + 1, 128):
        if D % td == 0:
            best = td
    return best


def hinge_loss(pos, neg, *, block_rows=None, block_cols=None,
               target_block_bytes=2 << 20):
    assert pos.shape == neg.shape, "pos/neg must have the same shape"
    assert pos.size > 0

    # Flatten to (M, D), last dim lane-dense.
    D = pos.shape[-1] if pos.ndim > 1 else pos.shape[0]
    pos2 = pos.reshape(-1, D)
    neg2 = neg.reshape(-1, D)
    M = pos2.shape[0]
    inv_total = 1.0 / float(pos.size)
    itemsize = jnp.dtype(pos.dtype).itemsize

    # Feature-dim block: full D, or a 128-multiple divisor of D for wide D,
    # so each block's bytes stay bounded independently of D.
    td = block_cols if block_cols is not None else _pick_td(D)
    assert D % td == 0

    # Row block sized so each input block is ~target_block_bytes (tunable).
    if block_rows is not None:
        tm = _round_up(block_rows, 8)
    else:
        rows = max(8, target_block_bytes // (td * itemsize))
        tm = _round_up(min(rows, _round_up(M, 8)), 8)

    # Pad rows (if needed) with hinge-neutral values: max(-2 - 0 + 1, 0) == 0,
    # so padding contributes nothing to the sum; mean still divides by M*D.
    M_pad = _round_up(M, tm)
    if M_pad != M:
        pad = ((0, M_pad - M), (0, 0))
        pos2 = jnp.pad(pos2, pad, constant_values=-2.0)
        neg2 = jnp.pad(neg2, pad, constant_values=0.0)

    grid = (M_pad // tm, D // td)

    out = pl.pallas_call(
        functools.partial(_hinge_loss_kernel, inv_total=inv_total),
        out_shape=jax.ShapeDtypeStruct((1, 1), jnp.float32),
        grid_spec=pltpu.PrefetchScalarGridSpec(
            num_scalar_prefetch=0,
            grid=grid,
            in_specs=[
                pl.BlockSpec((tm, td), lambda i, j: (i, j)),
                pl.BlockSpec((tm, td), lambda i, j: (i, j)),
            ],
            out_specs=pl.BlockSpec((1, 1), lambda i, j: (0, 0)),
            scratch_shapes=[pltpu.VMEM((8, td), jnp.float32)],
        ),
        compiler_params=pltpu.CompilerParams(
            dimension_semantics=("arbitrary", "arbitrary"),  # reduction axes
            vmem_limit_bytes=32 << 20,
        ),
    )(pos2, neg2)
    return out[0, 0]


if __name__ == "__main__":
    key = jax.random.PRNGKey(0)
    k1, k2, k3, k4 = jax.random.split(key, 4)

    # Case 1: aligned float32 inputs.
    pos = jax.random.normal(k1, (256, 512), dtype=jnp.float32)
    neg = jax.random.normal(k2, (256, 512), dtype=jnp.float32)
    loss = hinge_loss(pos, neg)
    jax.block_until_ready(loss)
    ref = jnp.mean(jnp.maximum(pos - neg + 1.0, 0.0))
    assert jnp.allclose(loss, ref, rtol=1e-6, atol=1e-6), (loss, ref)

    # Case 2: unaligned bf16 inputs (exercises row padding + in-kernel upcast).
    pos2 = jax.random.normal(k3, (50, 96), dtype=jnp.bfloat16)
    neg2 = jax.random.normal(k4, (50, 96), dtype=jnp.bfloat16)
    loss2 = hinge_loss(pos2, neg2)
    jax.block_until_ready(loss2)
    ref2 = jnp.mean(jnp.maximum(
        pos2.astype(jnp.float32) - neg2.astype(jnp.float32) + 1.0, 0.0))
    assert jnp.allclose(loss2, ref2, rtol=1e-5, atol=1e-5), (loss2, ref2)

    print("KERNEL_OK")
</pallas_src>

<mosaic_0001>
module attributes {stable_mosaic.version = 11 : i64} {
  func.func @_hinge_loss_kernel(%arg0: i32, %arg1: i32, %arg2: memref<256x512xf32, #tpu.memory_space<vmem>>, %arg3: memref<256x512xf32, #tpu.memory_space<vmem>>, %arg4: memref<1x1xf32, #tpu.memory_space<vmem>>, %arg5: memref<8x512xf32, #tpu.memory_space<vmem>>) attributes {dimension_semantics = [#tpu.dimension_semantics<arbitrary>, #tpu.dimension_semantics<arbitrary>], iteration_bounds = array<i64: 1, 1>, scalar_prefetch = 0 : i64, scratch_operands = 1 : i64, tpu.core_type = #tpu.core_type<tc>, window_params = [{transform_indices = @transform_0, window_bounds = array<i64: 256, 512>}, {transform_indices = @transform_1, window_bounds = array<i64: 256, 512>}, {pipeline_mode = #tpu.pipeline_mode<synchronous>, transform_indices = @transform_2, window_bounds = array<i64: 1, 1>}]} {
    %c0_i32 = arith.constant 0 : i32
    %0 = arith.cmpi eq, %arg0, %c0_i32 : i32
    %c0_i32_0 = arith.constant 0 : i32
    %1 = arith.cmpi eq, %arg1, %c0_i32_0 : i32
    %2 = arith.andi %0, %1 : i1
    %3 = arith.extui %2 : i1 to i32
    %c0_i32_1 = arith.constant 0 : i32
    %4 = arith.cmpi ne, %3, %c0_i32_1 : i32
    scf.if %4 {
      %cst_14 = arith.constant 0.000000e+00 : f32
      %22 = vector.broadcast %cst_14 : f32 to vector<8x512xf32>
      %c0_15 = arith.constant 0 : index
      %c0_16 = arith.constant 0 : index
      %23 = vector.load %arg5[%c0_15, %c0_16] : memref<8x512xf32, #tpu.memory_space<vmem>>, vector<8x512xf32>
      tpu.vector_store %arg5[%c0_15, %c0_16], %22 {strides = array<i32>} : memref<8x512xf32, #tpu.memory_space<vmem>>, vector<8x512xf32>,
    } else {
    }
    %c0 = arith.constant 0 : index
    %c0_2 = arith.constant 0 : index
    %5 = vector.load %arg2[%c0, %c0_2] : memref<256x512xf32, #tpu.memory_space<vmem>>, vector<256x512xf32>
    %c0_3 = arith.constant 0 : index
    %c0_4 = arith.constant 0 : index
    %6 = vector.load %arg3[%c0_3, %c0_4] : memref<256x512xf32, #tpu.memory_space<vmem>>, vector<256x512xf32>
    %7 = arith.subf %5, %6 : vector<256x512xf32>
    %cst = arith.constant 1.000000e+00 : f32
    %8 = vector.broadcast %cst : f32 to vector<256x512xf32>
    %9 = arith.addf %7, %8 : vector<256x512xf32>
    %cst_5 = arith.constant 0.000000e+00 : f32
    %10 = vector.broadcast %cst_5 : f32 to vector<256x512xf32>
    %11 = arith.maximumf %9, %10 : vector<256x512xf32>
    %c0_6 = arith.constant 0 : index
    %c0_7 = arith.constant 0 : index
    %12 = vector.load %arg5[%c0_6, %c0_7] : memref<8x512xf32, #tpu.memory_space<vmem>>, vector<8x512xf32>
    %13 = vector.shape_cast %11 : vector<256x512xf32> to vector<32x8x512xf32>
    %cst_8 = arith.constant dense<0.000000e+00> : vector<8x512xf32>
    %14 = vector.multi_reduction <add>, %13, %cst_8 [0] : vector<32x8x512xf32> to vector<8x512xf32>
    %15 = arith.addf %12, %14 : vector<8x512xf32>
    %c0_9 = arith.constant 0 : index
    %c0_10 = arith.constant 0 : index
    %16 = vector.load %arg5[%c0_9, %c0_10] : memref<8x512xf32, #tpu.memory_space<vmem>>, vector<8x512xf32>
    tpu.vector_store %arg5[%c0_9, %c0_10], %15 {strides = array<i32>} : memref<8x512xf32, #tpu.memory_space<vmem>>, vector<8x512xf32>,
    %c0_i32_11 = arith.constant 0 : i32
    %17 = arith.cmpi eq, %arg0, %c0_i32_11 : i32
    %c0_i32_12 = arith.constant 0 : i32
    %18 = arith.cmpi eq, %arg1, %c0_i32_12 : i32
    %19 = arith.andi %17, %18 : i1
    %20 = arith.extui %19 : i1 to i32
    %c0_i32_13 = arith.constant 0 : i32
    %21 = arith.cmpi ne, %20, %c0_i32_13 : i32
    scf.if %21 {
      %c0_14 = arith.constant 0 : index
      %c0_15 = arith.constant 0 : index
      %22 = vector.load %arg5[%c0_14, %c0_15] : memref<8x512xf32, #tpu.memory_space<vmem>>, vector<8x512xf32>
      %23 = vector.shape_cast %22 : vector<8x512xf32> to vector<1x8x512xf32>
      %cst_16 = arith.constant dense<0.000000e+00> : vector<1xf32>
      %24 = vector.multi_reduction <add>, %23, %cst_16 [1, 2] : vector<1x8x512xf32> to vector<1xf32>
      %25 = vector.shape_cast %24 : vector<1xf32> to vector<1x1x1xf32>
      %26 = vector.extract %25[0, 0, 0] : f32 from vector<1x1x1xf32>
      %27 = vector.broadcast %26 : f32 to vector<1x1xf32>
      %cst_17 = arith.constant 7.62939453E-6 : f32
      %28 = vector.broadcast %cst_17 : f32 to vector<1x1xf32>
      %29 = arith.mulf %27, %28 : vector<1x1xf32>
      %c0_18 = arith.constant 0 : index
      %c0_19 = arith.constant 0 : index
      %30 = vector.load %arg4[%c0_18, %c0_19] : memref<1x1xf32, #tpu.memory_space<vmem>>, vector<1x1xf32>
      tpu.vector_store %arg4[%c0_18, %c0_19], %29 {strides = array<i32>} : memref<1x1xf32, #tpu.memory_space<vmem>>, vector<1x1xf32>,
    } else {
    }
    return
  }
  func.func @transform_0(%arg0: i32, %arg1: i32) -> (i32, i32) {
    %c0_i32 = arith.constant 0 : i32
    return %arg0, %arg1 : i32, i32
  }
  func.func @transform_1(%arg0: i32, %arg1: i32) -> (i32, i32) {
    %c0_i32 = arith.constant 0 : i32
    return %arg0, %arg1 : i32, i32
  }
  func.func @transform_2(%arg0: i32, %arg1: i32) -> (i32, i32) {
    %c0_i32 = arith.constant 0 : i32
    %c0_i32_0 = arith.constant 0 : i32
    %c0_i32_1 = arith.constant 0 : i32
    return %c0_i32, %c0_i32_0 : i32, i32
  }
}

</mosaic_0001>

<llo_original>
// kernel: tpu_custom_call.1
$region0: #{tpu_custom_call.1}
  #allocation0 [shape = 'u32[]', space=smem, size = 0x4, offset = 0x4, fixed_abs, tag = 'smem constant byte address 0x4 - core index']
  #allocation1 [shape = 'u32[144,128]{1,0:T(1,128)}', space=vmem, size = 0x12000, scoped, tag = 'internal scratch']
  #allocation2 [shape = 'f32[8,512]{1,0:T(8,128)}', space=vmem, size = 0x4000, scoped, tag = 'scratch operand']
  %s0 = inlined_call_operand.hbm [shape: f32[256,512], index: 0, kind: input, shape index: {}]
  %s1 = inlined_call_operand.hbm [shape: f32[256,512], index: 1, kind: input, shape index: {}]
  %s2 = inlined_call_operand.hbm [shape: f32[1,1], index: 2, kind: output, shape index: {}]
  %s3 = sld [smem:[#allocation0]]
  $region34: #{tpu_custom_call.1} parent=0
    _
  %s5 = ssub.s32 1, %s3
  %s6 = scalar_select 0, %s5, %s3
  $region1: #{tpu_custom_call.1} parent=0
    #allocation3 [shape = 'u8[524288]{0}', space=vmem, size = 0x80000, scoped, tag = 'input window, operand 0, single buffered']
    #allocation4 [shape = 's32[1]{0}', space=sflag, size = 0x4, scoped, tag = 'scoped memory for tpu_custom_call.1']
    #allocation5 [shape = 's32[1]{0}', space=sflag, size = 0x4, scoped, tag = 'scoped memory for tpu_custom_call.1']
    #allocation6 [shape = 'u8[524288]{0}', space=vmem, size = 0x80000, scoped, tag = 'input window, operand 1, single buffered']
    #allocation7 [shape = 's32[1]{0}', space=sflag, size = 0x4, scoped, tag = 'scoped memory for tpu_custom_call.1']
    #allocation8 [shape = 'u8[512]{0}', space=vmem, size = 0x400, scoped, tag = 'output window, operand 0, single buffered']
    %7 = vsyncpa [#allocation4], 0
    %8 = vsyncpa [#allocation7], 0
    %9 = vsyncpa [#allocation5], 0
    // Predicated region
    $region2: #{tpu_custom_call.1} parent=1 // pred_check
      _
    $region3: #{tpu_custom_call.1} parent=1 // pred_check_branch
      %11 = sbr.rel (0) target = $region5
    $region4: #{tpu_custom_call.1} parent=1 // pred_region
      %s13 = ssub.s32 16384, 16384
      %14 = vsyncadd [#allocation4], %s13
      %s15 = sshll.u32 [#allocation3], 4
      %s16 = int_to_ptr.vmem [resolvable:$true] %s15
      %21 = dma.hbm_to_vmem [thread:$0]  %s0, 16384, %s16, [#allocation4], 512, 512, 32
    $region5: #{tpu_custom_call.1} parent=1 // pred_fallthru
      _
    // Predicated region
    $region6: #{tpu_custom_call.1} parent=1 // pred_check
      _
    $region7: #{tpu_custom_call.1} parent=1 // pred_check_branch
      %23 = sbr.rel (0) target = $region9
    $region8: #{tpu_custom_call.1} parent=1 // pred_region
      %s25 = ssub.s32 16384, 16384
      %26 = vsyncadd [#allocation7], %s25
      %s27 = sshll.u32 [#allocation6], 4
      %s28 = int_to_ptr.vmem [resolvable:$true] %s27
      %33 = dma.hbm_to_vmem [thread:$0]  %s1, 16384, %s28, [#allocation7], 512, 512, 32
    $region9: #{tpu_custom_call.1} parent=1 // pred_fallthru
      _
    // Predicated region
    $region10: #{tpu_custom_call.1} parent=1 // pred_check
      _
    $region11: #{tpu_custom_call.1} parent=1 // pred_check_branch
      %35 = sbr.rel (0) target = $region13
    $region12: #{tpu_custom_call.1} parent=1 // pred_region
      %36 = dma.done [#allocation4], 16384
    $region13: #{tpu_custom_call.1} parent=1 // pred_fallthru
      _
    // Predicated region
    $region14: #{tpu_custom_call.1} parent=1 // pred_check
      _
    $region15: #{tpu_custom_call.1} parent=1 // pred_check_branch
      %38 = sbr.rel (0) target = $region17
    $region16: #{tpu_custom_call.1} parent=1 // pred_region
      %39 = dma.done [#allocation7], 16384
    $region17: #{tpu_custom_call.1} parent=1 // pred_fallthru
      _
    %p40 = scmp.eq.s32.totalorder 0, 0
    %p41 = scmp.eq.s32.totalorder 0, 0
    %p42 = pnand %p40, %p41
    %p43 = pneg %p42
    // Predicated region
    $region18: #{tpu_custom_call.1} parent=1 // pred_check
      _
    $region19: #{tpu_custom_call.1} parent=1 // pred_check_branch
      %45 = sbr.rel (%p42) target = $region21
    $region20: #{tpu_custom_call.1} parent=1 // pred_region
      %46 = vst [vmem:[#allocation2] sm:$0xff] 0.0
      %47 = vst [vmem:[#allocation2 + $0x8] sm:$0xff] 0.0
      %48 = vst [vmem:[#allocation2 + $0x10] sm:$0xff] 0.0
      %49 = vst [vmem:[#allocation2 + $0x18] sm:$0xff] 0.0
    $region21: #{tpu_custom_call.1} parent=1 // pred_fallthru
      _
    %v50 = vld [vmem:[#allocation3] sm:$0xff]
    %v51 = vld [vmem:[#allocation3 + $0x8] sm:$0xff]
    %v52 = vld [vmem:[#allocation3 + $0x10] sm:$0xff]
    %v53 = vld [vmem:[#allocation3 + $0x18] sm:$0xff]
    %v54 = vld [vmem:[#allocation3 + $0x20] sm:$0xff]
    %v55 = vld [vmem:[#allocation3 + $0x28] sm:$0xff]
    %v56 = vld [vmem:[#allocation3 + $0x30] sm:$0xff]
    %v57 = vld [vmem:[#allocation3 + $0x38] sm:$0xff]
    %v58 = vld [vmem:[#allocation3 + $0x40] sm:$0xff]
    %v59 = vld [vmem:[#allocation3 + $0x48] sm:$0xff]
    %v60 = vld [vmem:[#allocation3 + $0x50] sm:$0xff]
    %v61 = vld [vmem:[#allocation3 + $0x58] sm:$0xff]
    %v62 = vld [vmem:[#allocation3 + $0x60] sm:$0xff]
    %v63 = vld [vmem:[#allocation3 + $0x68] sm:$0xff]
    %v64 = vld [vmem:[#allocation3 + $0x70] sm:$0xff]
    %v65 = vld [vmem:[#allocation3 + $0x78] sm:$0xff]
    %v66 = vld [vmem:[#allocation3 + $0x80] sm:$0xff]
    %v67 = vld [vmem:[#allocation3 + $0x88] sm:$0xff]
    %v68 = vld [vmem:[#allocation3 + $0x90] sm:$0xff]
    %v69 = vld [vmem:[#allocation3 + $0x98] sm:$0xff]
    %v70 = vld [vmem:[#allocation3 + $0xa0] sm:$0xff]
    %v71 = vld [vmem:[#allocation3 + $0xa8] sm:$0xff]
    %v72 = vld [vmem:[#allocation3 + $0xb0] sm:$0xff]
    %v73 = vld [vmem:[#allocation3 + $0xb8] sm:$0xff]
    %v74 = vld [vmem:[#allocation3 + $0xc0] sm:$0xff]
    %v75 = vld [vmem:[#allocation3 + $0xc8] sm:$0xff]
    %v76 = vld [vmem:[#allocation3 + $0xd0] sm:$0xff]
    %v77 = vld [vmem:[#allocation3 + $0xd8] sm:$0xff]
    %v78 = vld [vmem:[#allocation3 + $0xe0] sm:$0xff]
    %v79 = vld [vmem:[#allocation3 + $0xe8] sm:$0xff]
    %v80 = vld [vmem:[#allocation3 + $0xf0] sm:$0xff]
    %v81 = vld [vmem:[#allocation3 + $0xf8] sm:$0xff]
    %v82 = vld [vmem:[#allocation3 + $0x100] sm:$0xff]
    %v83 = vld [vmem:[#allocation3 + $0x108] sm:$0xff]
    %v84 = vld [vmem:[#allocation3 + $0x110] sm:$0xff]
    %v85 = vld [vmem:[#allocation3 + $0x118] sm:$0xff]
    %v86 = vld [vmem:[#allocation3 + $0x120] sm:$0xff]
    %v87 = vld [vmem:[#allocation3 + $0x128] sm:$0xff]
    %v88 = vld [vmem:[#allocation3 + $0x130] sm:$0xff]
    %v89 = vld [vmem:[#allocation3 + $0x138] sm:$0xff]
    %v90 = vld [vmem:[#allocation3 + $0x140] sm:$0xff]
    %v91 = vld [vmem:[#allocation3 + $0x148] sm:$0xff]
    %v92 = vld [vmem:[#allocation3 + $0x150] sm:$0xff]
    %v93 = vld [vmem:[#allocation3 + $0x158] sm:$0xff]
    %v94 = vld [vmem:[#allocation3 + $0x160] sm:$0xff]
    %v95 = vld [vmem:[#allocation3 + $0x168] sm:$0xff]
    %v96 = vld [vmem:[#allocation3 + $0x170] sm:$0xff]
    %v97 = vld [vmem:[#allocation3 + $0x178] sm:$0xff]
    %v98 = vld [vmem:[#allocation3 + $0x180] sm:$0xff]
    %v99 = vld [vmem:[#allocation3 + $0x188] sm:$0xff]
    %v100 = vld [vmem:[#allocation3 + $0x190] sm:$0xff]
    %v101 = vld [vmem:[#allocation3 + $0x198] sm:$0xff]
    %v102 = vld [vmem:[#allocation3 + $0x1a0] sm:$0xff]
    %v103 = vld [vmem:[#allocation3 + $0x1a8] sm:$0xff]
    %v104 = vld [vmem:[#allocation3 + $0x1b0] sm:$0xff]
    %v105 = vld [vmem:[#allocation3 + $0x1b8] sm:$0xff]
    %v106 = vld [vmem:[#allocation3 + $0x1c0] sm:$0xff]
    %v107 = vld [vmem:[#allocation3 + $0x1c8] sm:$0xff]
    %v108 = vld [vmem:[#allocation3 + $0x1d0] sm:$0xff]
    %v109 = vld [vmem:[#allocation3 + $0x1d8] sm:$0xff]
    %v110 = vld [vmem:[#allocation3 + $0x1e0] sm:$0xff]
    %v111 = vld [vmem:[#allocation3 + $0x1e8] sm:$0xff]
    %v112 = vld [vmem:[#allocation3 + $0x1f0] sm:$0xff]
    %v113 = vld [vmem:[#allocation3 + $0x1f8] sm:$0xff]
    %v114 = vld [vmem:[#allocation3 + $0x200] sm:$0xff]
    %v115 = vld [vmem:[#allocation3 + $0x208] sm:$0xff]
    %v116 = vld [vmem:[#allocation3 + $0x210] sm:$0xff]
    %v117 = vld [vmem:[#allocation3 + $0x218] sm:$0xff]
    %v118 = vld [vmem:[#allocation3 + $0x220] sm:$0xff]
    %v119 = vld [vmem:[#allocation3 + $0x228] sm:$0xff]
    %v120 = vld [vmem:[#allocation3 + $0x230] sm:$0xff]
    %v121 = vld [vmem:[#allocation3 + $0x238] sm:$0xff]
    %v122 = vld [vmem:[#allocation3 + $0x240] sm:$0xff]
    %v123 = vld [vmem:[#allocation3 + $0x248] sm:$0xff]
    %v124 = vld [vmem:[#allocation3 + $0x250] sm:$0xff]
    %v125 = vld [vmem:[#allocation3 + $0x258] sm:$0xff]
    %v126 = vld [vmem:[#allocation3 + $0x260] sm:$0xff]
    %v127 = vld [vmem:[#allocation3 + $0x268] sm:$0xff]
    %v128 = vld [vmem:[#allocation3 + $0x270] sm:$0xff]
    %v129 = vld [vmem:[#allocation3 + $0x278] sm:$0xff]
    %v130 = vld [vmem:[#allocation3 + $0x280] sm:$0xff]
    %v131 = vld [vmem:[#allocation3 + $0x288] sm:$0xff]
    %v132 = vld [vmem:[#allocation3 + $0x290] sm:$0xff]
    %v133 = vld [vmem:[#allocation3 + $0x298] sm:$0xff]
    %v134 = vld [vmem:[#allocation3 + $0x2a0] sm:$0xff]
    %v135 = vld [vmem:[#allocation3 + $0x2a8] sm:$0xff]
    %v136 = vld [vmem:[#allocation3 + $0x2b0] sm:$0xff]
    %v137 = vld [vmem:[#allocation3 + $0x2b8] sm:$0xff]
    %v138 = vld [vmem:[#allocation3 + $0x2c0] sm:$0xff]
    %v139 = vld [vmem:[#allocation3 + $0x2c8] sm:$0xff]
    %v140 = vld [vmem:[#allocation3 + $0x2d0] sm:$0xff]
    %v141 = vld [vmem:[#allocation3 + $0x2d8] sm:$0xff]
    %v142 = vld [vmem:[#allocation3 + $0x2e0] sm:$0xff]
    %v143 = vld [vmem:[#allocation3 + $0x2e8] sm:$0xff]
    %v144 = vld [vmem:[#allocation3 + $0x2f0] sm:$0xff]
    %v145 = vld [vmem:[#allocation3 + $0x2f8] sm:$0xff]
    %v146 = vld [vmem:[#allocation3 + $0x300] sm:$0xff]
    %v147 = vld [vmem:[#allocation3 + $0x308] sm:$0xff]
    %v148 = vld [vmem:[#allocation3 + $0x310] sm:$0xff]
    %v149 = vld [vmem:[#allocation3 + $0x318] sm:$0xff]
    %v150 = vld [vmem:[#allocation3 + $0x320] sm:$0xff]
    %v151 = vld [vmem:[#allocation3 + $0x328] sm:$0xff]
    %v152 = vld [vmem:[#allocation3 + $0x330] sm:$0xff]
    %v153 = vld [vmem:[#allocation3 + $0x338] sm:$0xff]
    %v154 = vld [vmem:[#allocation3 + $0x340] sm:$0xff]
    %v155 = vld [vmem:[#allocation3 + $0x348] sm:$0xff]
    %v156 = vld [vmem:[#allocation3 + $0x350] sm:$0xff]
    %v157 = vld [vmem:[#allocation3 + $0x358] sm:$0xff]
    %v158 = vld [vmem:[#allocation3 + $0x360] sm:$0xff]
    %v159 = vld [vmem:[#allocation3 + $0x368] sm:$0xff]
    %v160 = vld [vmem:[#allocation3 + $0x370] sm:$0xff]
    %v161 = vld [vmem:[#allocation3 + $0x378] sm:$0xff]
    %v162 = vld [vmem:[#allocation3 + $0x380] sm:$0xff]
    %v163 = vld [vmem:[#allocation3 + $0x388] sm:$0xff]
    %v164 = vld [vmem:[#allocation3 + $0x390] sm:$0xff]
    %v165 = vld [vmem:[#allocation3 + $0x398] sm:$0xff]
    %v166 = vld [vmem:[#allocation3 + $0x3a0] sm:$0xff]
    %v167 = vld [vmem:[#allocation3 + $0x3a8] sm:$0xff]
    %v168 = vld [vmem:[#allocation3 + $0x3b0] sm:$0xff]
    %v169 = vld [vmem:[#allocation3 + $0x3b8] sm:$0xff]
    %v170 = vld [vmem:[#allocation3 + $0x3c0] sm:$0xff]
    %v171 = vld [vmem:[#allocation3 + $0x3c8] sm:$0xff]
    %v172 = vld [vmem:[#allocation3 + $0x3d0] sm:$0xff]
    %v173 = vld [vmem:[#allocation3 + $0x3d8] sm:$0xff]
    %v174 = vld [vmem:[#allocation3 + $0x3e0] sm:$0xff]
    %v175 = vld [vmem:[#allocation3 + $0x3e8] sm:$0xff]
    %v176 = vld [vmem:[#allocation3 + $0x3f0] sm:$0xff]
    %v177 = vld [vmem:[#allocation3 + $0x3f8] sm:$0xff]
    %v178 = vld [vmem:[#allocation6] sm:$0xff]
    %v179 = vld [vmem:[#allocation6 + $0x8] sm:$0xff]
    %v180 = vld [vmem:[#allocation6 + $0x10] sm:$0xff]
    %v181 = vld [vmem:[#allocation6 + $0x18] sm:$0xff]
    %v182 = vld [vmem:[#allocation6 + $0x20] sm:$0xff]
    %v183 = vld [vmem:[#allocation6 + $0x28] sm:$0xff]
    %v184 = vld [vmem:[#allocation6 + $0x30] sm:$0xff]
    %v185 = vld [vmem:[#allocation6 + $0x38] sm:$0xff]
    %v186 = vld [vmem:[#allocation6 + $0x40] sm:$0xff]
    %v187 = vld [vmem:[#allocation6 + $0x48] sm:$0xff]
    %v188 = vld [vmem:[#allocation6 + $0x50] sm:$0xff]
    %v189 = vld [vmem:[#allocation6 + $0x58] sm:$0xff]
    %v190 = vld [vmem:[#allocation6 + $0x60] sm:$0xff]
    %v191 = vld [vmem:[#allocation6 + $0x68] sm:$0xff]
    %v192 = vld [vmem:[#allocation6 + $0x70] sm:$0xff]
    %v193 = vld [vmem:[#allocation6 + $0x78] sm:$0xff]
    %v194 = vld [vmem:[#allocation6 + $0x80] sm:$0xff]
    %v195 = vld [vmem:[#allocation6 + $0x88] sm:$0xff]
    %v196 = vld [vmem:[#allocation6 + $0x90] sm:$0xff]
    %v197 = vld [vmem:[#allocation6 + $0x98] sm:$0xff]
    %v198 = vld [vmem:[#allocation6 + $0xa0] sm:$0xff]
    %v199 = vld [vmem:[#allocation6 + $0xa8] sm:$0xff]
    %v200 = vld [vmem:[#allocation6 + $0xb0] sm:$0xff]
    %v201 = vld [vmem:[#allocation6 + $0xb8] sm:$0xff]
    %v202 = vld [vmem:[#allocation6 + $0xc0] sm:$0xff]
    %v203 = vld [vmem:[#allocation6 + $0xc8] sm:$0xff]
    %v204 = vld [vmem:[#allocation6 + $0xd0] sm:$0xff]
    %v205 = vld [vmem:[#allocation6 + $0xd8] sm:$0xff]
    %v206 = vld [vmem:[#allocation6 + $0xe0] sm:$0xff]
    %v207 = vld [vmem:[#allocation6 + $0xe8] sm:$0xff]
    %v208 = vld [vmem:[#allocation6 + $0xf0] sm:$0xff]
    %v209 = vld [vmem:[#allocation6 + $0xf8] sm:$0xff]
    %v210 = vld [vmem:[#allocation6 + $0x100] sm:$0xff]
    %v211 = vld [vmem:[#allocation6 + $0x108] sm:$0xff]
    %v212 = vld [vmem:[#allocation6 + $0x110] sm:$0xff]
    %v213 = vld [vmem:[#allocation6 + $0x118] sm:$0xff]
    %v214 = vld [vmem:[#allocation6 + $0x120] sm:$0xff]
    %v215 = vld [vmem:[#allocation6 + $0x128] sm:$0xff]
    %v216 = vld [vmem:[#allocation6 + $0x130] sm:$0xff]
    %v217 = vld [vmem:[#allocation6 + $0x138] sm:$0xff]
    %v218 = vld [vmem:[#allocation6 + $0x140] sm:$0xff]
    %v219 = vld [vmem:[#allocation6 + $0x148] sm:$0xff]
    %v220 = vld [vmem:[#allocation6 + $0x150] sm:$0xff]
    %v221 = vld [vmem:[#allocation6 + $0x158] sm:$0xff]
    %v222 = vld [vmem:[#allocation6 + $0x160] sm:$0xff]
    %v223 = vld [vmem:[#allocation6 + $0x168] sm:$0xff]
    %v224 = vld [vmem:[#allocation6 + $0x170] sm:$0xff]
    %v225 = vld [vmem:[#allocation6 + $0x178] sm:$0xff]
    %v226 = vld [vmem:[#allocation6 + $0x180] sm:$0xff]
    %v227 = vld [vmem:[#allocation6 + $0x188] sm:$0xff]
    %v228 = vld [vmem:[#allocation6 + $0x190] sm:$0xff]
    %v229 = vld [vmem:[#allocation6 + $0x198] sm:$0xff]
    %v230 = vld [vmem:[#allocation6 + $0x1a0] sm:$0xff]
    %v231 = vld [vmem:[#allocation6 + $0x1a8] sm:$0xff]
    %v232 = vld [vmem:[#allocation6 + $0x1b0] sm:$0xff]
    %v233 = vld [vmem:[#allocation6 + $0x1b8] sm:$0xff]
    %v234 = vld [vmem:[#allocation6 + $0x1c0] sm:$0xff]
    %v235 = vld [vmem:[#allocation6 + $0x1c8] sm:$0xff]
    %v236 = vld [vmem:[#allocation6 + $0x1d0] sm:$0xff]
    %v237 = vld [vmem:[#allocation6 + $0x1d8] sm:$0xff]
    %v238 = vld [vmem:[#allocation6 + $0x1e0] sm:$0xff]
    %v239 = vld [vmem:[#allocation6 + $0x1e8] sm:$0xff]
    %v240 = vld [vmem:[#allocation6 + $0x1f0] sm:$0xff]
    %v241 = vld [vmem:[#allocation6 + $0x1f8] sm:$0xff]
    %v242 = vld [vmem:[#allocation6 + $0x200] sm:$0xff]
    %v243 = vld [vmem:[#allocation6 + $0x208] sm:$0xff]
    %v244 = vld [vmem:[#allocation6 + $0x210] sm:$0xff]
    %v245 = vld [vmem:[#allocation6 + $0x218] sm:$0xff]
    %v246 = vld [vmem:[#allocation6 + $0x220] sm:$0xff]
    %v247 = vld [vmem:[#allocation6 + $0x228] sm:$0xff]
    %v248 = vld [vmem:[#allocation6 + $0x230] sm:$0xff]
    %v249 = vld [vmem:[#allocation6 + $0x238] sm:$0xff]
    %v250 = vld [vmem:[#allocation6 + $0x240] sm:$0xff]
    %v251 = vld [vmem:[#allocation6 + $0x248] sm:$0xff]
    %v252 = vld [vmem:[#allocation6 + $0x250] sm:$0xff]
    %v253 = vld [vmem:[#allocation6 + $0x258] sm:$0xff]
    %v254 = vld [vmem:[#allocation6 + $0x260] sm:$0xff]
    %v255 = vld [vmem:[#allocation6 + $0x268] sm:$0xff]
    %v256 = vld [vmem:[#allocation6 + $0x270] sm:$0xff]
    %v257 = vld [vmem:[#allocation6 + $0x278] sm:$0xff]
    %v258 = vld [vmem:[#allocation6 + $0x280] sm:$0xff]
    %v259 = vld [vmem:[#allocation6 + $0x288] sm:$0xff]
    %v260 = vld [vmem:[#allocation6 + $0x290] sm:$0xff]
    %v261 = vld [vmem:[#allocation6 + $0x298] sm:$0xff]
    %v262 = vld [vmem:[#allocation6 + $0x2a0] sm:$0xff]
    %v263 = vld [vmem:[#allocation6 + $0x2a8] sm:$0xff]
    %v264 = vld [vmem:[#allocation6 + $0x2b0] sm:$0xff]
    %v265 = vld [vmem:[#allocation6 + $0x2b8] sm:$0xff]
    %v266 = vld [vmem:[#allocation6 + $0x2c0] sm:$0xff]
    %v267 = vld [vmem:[#allocation6 + $0x2c8] sm:$0xff]
    %v268 = vld [vmem:[#allocation6 + $0x2d0] sm:$0xff]
    %v269 = vld [vmem:[#allocation6 + $0x2d8] sm:$0xff]
    %v270 = vld [vmem:[#allocation6 + $0x2e0] sm:$0xff]
    %v271 = vld [vmem:[#allocation6 + $0x2e8] sm:$0xff]
    %v272 = vld [vmem:[#allocation6 + $0x2f0] sm:$0xff]
    %v273 = vld [vmem:[#allocation6 + $0x2f8] sm:$0xff]
    %v274 = vld [vmem:[#allocation6 + $0x300] sm:$0xff]
    %v275 = vld [vmem:[#allocation6 + $0x308] sm:$0xff]
    %v276 = vld [vmem:[#allocation6 + $0x310] sm:$0xff]
    %v277 = vld [vmem:[#allocation6 + $0x318] sm:$0xff]
    %v278 = vld [vmem:[#allocation6 + $0x320] sm:$0xff]
    %v279 = vld [vmem:[#allocation6 + $0x328] sm:$0xff]
    %v280 = vld [vmem:[#allocation6 + $0x330] sm:$0xff]
    %v281 = vld [vmem:[#allocation6 + $0x338] sm:$0xff]
    %v282 = vld [vmem:[#allocation6 + $0x340] sm:$0xff]
    %v283 = vld [vmem:[#allocation6 + $0x348] sm:$0xff]
    %v284 = vld [vmem:[#allocation6 + $0x350] sm:$0xff]
    %v285 = vld [vmem:[#allocation6 + $0x358] sm:$0xff]
    %v286 = vld [vmem:[#allocation6 + $0x360] sm:$0xff]
    %v287 = vld [vmem:[#allocation6 + $0x368] sm:$0xff]
    %v288 = vld [vmem:[#allocation6 + $0x370] sm:$0xff]
    %v289 = vld [vmem:[#allocation6 + $0x378] sm:$0xff]
    %v290 = vld [vmem:[#allocation6 + $0x380] sm:$0xff]
    %v291 = vld [vmem:[#allocation6 + $0x388] sm:$0xff]
    %v292 = vld [vmem:[#allocation6 + $0x390] sm:$0xff]
    %v293 = vld [vmem:[#allocation6 + $0x398] sm:$0xff]
    %v294 = vld [vmem:[#allocation6 + $0x3a0] sm:$0xff]
    %v295 = vld [vmem:[#allocation6 + $0x3a8] sm:$0xff]
    %v296 = vld [vmem:[#allocation6 + $0x3b0] sm:$0xff]
    %v297 = vld [vmem:[#allocation6 + $0x3b8] sm:$0xff]
    %v298 = vld [vmem:[#allocation6 + $0x3c0] sm:$0xff]
    %v299 = vld [vmem:[#allocation6 + $0x3c8] sm:$0xff]
    %v300 = vld [vmem:[#allocation6 + $0x3d0] sm:$0xff]
    %v301 = vld [vmem:[#allocation6 + $0x3d8] sm:$0xff]
    %v302 = vld [vmem:[#allocation6 + $0x3e0] sm:$0xff]
    %v303 = vld [vmem:[#allocation6 + $0x3e8] sm:$0xff]
    %v304 = vld [vmem:[#allocation6 + $0x3f0] sm:$0xff]
    %v305 = vld [vmem:[#allocation6 + $0x3f8] sm:$0xff]
    %v306 = vsub.f32 %v50, %v178
    %v307 = vsub.f32 %v51, %v179
    %v308 = vsub.f32 %v52, %v180
    %v309 = vsub.f32 %v53, %v181
    %v310 = vsub.f32 %v54, %v182
    %v311 = vsub.f32 %v55, %v183
    %v312 = vsub.f32 %v56, %v184
    %v313 = vsub.f32 %v57, %v185
    %v314 = vsub.f32 %v58, %v186
    %v315 = vsub.f32 %v59, %v187
    %v316 = vsub.f32 %v60, %v188
    %v317 = vsub.f32 %v61, %v189
    %v318 = vsub.f32 %v62, %v190
    %v319 = vsub.f32 %v63, %v191
    %v320 = vsub.f32 %v64, %v192
    %v321 = vsub.f32 %v65, %v193
    %v322 = vsub.f32 %v66, %v194
    %v323 = vsub.f32 %v67, %v195
    %v324 = vsub.f32 %v68, %v196
    %v325 = vsub.f32 %v69, %v197
    %v326 = vsub.f32 %v70, %v198
    %v327 = vsub.f32 %v71, %v199
    %v328 = vsub.f32 %v72, %v200
    %v329 = vsub.f32 %v73, %v201
    %v330 = vsub.f32 %v74, %v202
    %v331 = vsub.f32 %v75, %v203
    %v332 = vsub.f32 %v76, %v204
    %v333 = vsub.f32 %v77, %v205
    %v334 = vsub.f32 %v78, %v206
    %v335 = vsub.f32 %v79, %v207
    %v336 = vsub.f32 %v80, %v208
    %v337 = vsub.f32 %v81, %v209
    %v338 = vsub.f32 %v82, %v210
    %v339 = vsub.f32 %v83, %v211
    %v340 = vsub.f32 %v84, %v212
    %v341 = vsub.f32 %v85, %v213
    %v342 = vsub.f32 %v86, %v214
    %v343 = vsub.f32 %v87, %v215
    %v344 = vsub.f32 %v88, %v216
    %v345 = vsub.f32 %v89, %v217
    %v346 = vsub.f32 %v90, %v218
    %v347 = vsub.f32 %v91, %v219
    %v348 = vsub.f32 %v92, %v220
    %v349 = vsub.f32 %v93, %v221
    %v350 = vsub.f32 %v94, %v222
    %v351 = vsub.f32 %v95, %v223
    %v352 = vsub.f32 %v96, %v224
    %v353 = vsub.f32 %v97, %v225
    %v354 = vsub.f32 %v98, %v226
    %v355 = vsub.f32 %v99, %v227
    %v356 = vsub.f32 %v100, %v228
    %v357 = vsub.f32 %v101, %v229
    %v358 = vsub.f32 %v102, %v230
    %v359 = vsub.f32 %v103, %v231
    %v360 = vsub.f32 %v104, %v232
    %v361 = vsub.f32 %v105, %v233
    %v362 = vsub.f32 %v106, %v234
    %v363 = vsub.f32 %v107, %v235
    %v364 = vsub.f32 %v108, %v236
    %v365 = vsub.f32 %v109, %v237
    %v366 = vsub.f32 %v110, %v238
    %v367 = vsub.f32 %v111, %v239
    %v368 = vsub.f32 %v112, %v240
    %v369 = vsub.f32 %v113, %v241
    %v370 = vsub.f32 %v114, %v242
    %v371 = vsub.f32 %v115, %v243
    %v372 = vsub.f32 %v116, %v244
    %v373 = vsub.f32 %v117, %v245
    %v374 = vsub.f32 %v118, %v246
    %v375 = vsub.f32 %v119, %v247
    %v376 = vsub.f32 %v120, %v248
    %v377 = vsub.f32 %v121, %v249
    %v378 = vsub.f32 %v122, %v250
    %v379 = vsub.f32 %v123, %v251
    %v380 = vsub.f32 %v124, %v252
    %v381 = vsub.f32 %v125, %v253
    %v382 = vsub.f32 %v126, %v254
    %v383 = vsub.f32 %v127, %v255
    %v384 = vsub.f32 %v128, %v256
    %v385 = vsub.f32 %v129, %v257
    %v386 = vsub.f32 %v130, %v258
    %v387 = vsub.f32 %v131, %v259
    %v388 = vsub.f32 %v132, %v260
    %v389 = vsub.f32 %v133, %v261
    %v390 = vsub.f32 %v134, %v262
    %v391 = vsub.f32 %v135, %v263
    %v392 = vsub.f32 %v136, %v264
    %v393 = vsub.f32 %v137, %v265
    %v394 = vsub.f32 %v138, %v266
    %v395 = vsub.f32 %v139, %v267
    %v396 = vsub.f32 %v140, %v268
    %v397 = vsub.f32 %v141, %v269
    %v398 = vsub.f32 %v142, %v270
    %v399 = vsub.f32 %v143, %v271
    %v400 = vsub.f32 %v144, %v272
    %v401 = vsub.f32 %v145, %v273
    %v402 = vsub.f32 %v146, %v274
    %v403 = vsub.f32 %v147, %v275
    %v404 = vsub.f32 %v148, %v276
    %v405 = vsub.f32 %v149, %v277
    %v406 = vsub.f32 %v150, %v278
    %v407 = vsub.f32 %v151, %v279
    %v408 = vsub.f32 %v152, %v280
    %v409 = vsub.f32 %v153, %v281
    %v410 = vsub.f32 %v154, %v282
    %v411 = vsub.f32 %v155, %v283
    %v412 = vsub.f32 %v156, %v284
    %v413 = vsub.f32 %v157, %v285
    %v414 = vsub.f32 %v158, %v286
    %v415 = vsub.f32 %v159, %v287
    %v416 = vsub.f32 %v160, %v288
    %v417 = vsub.f32 %v161, %v289
    %v418 = vsub.f32 %v162, %v290
    %v419 = vsub.f32 %v163, %v291
    %v420 = vsub.f32 %v164, %v292
    %v421 = vsub.f32 %v165, %v293
    %v422 = vsub.f32 %v166, %v294
    %v423 = vsub.f32 %v167, %v295
    %v424 = vsub.f32 %v168, %v296
    %v425 = vsub.f32 %v169, %v297
    %v426 = vsub.f32 %v170, %v298
    %v427 = vsub.f32 %v171, %v299
    %v428 = vsub.f32 %v172, %v300
    %v429 = vsub.f32 %v173, %v301
    %v430 = vsub.f32 %v174, %v302
    %v431 = vsub.f32 %v175, %v303
    %v432 = vsub.f32 %v176, %v304
    %v433 = vsub.f32 %v177, %v305
    %v434 = vadd.f32 %v306, 1.0
    %v435 = vadd.f32 %v307, 1.0
    %v436 = vadd.f32 %v308, 1.0
    %v437 = vadd.f32 %v309, 1.0
    %v438 = vadd.f32 %v310, 1.0
    %v439 = vadd.f32 %v311, 1.0
    %v440 = vadd.f32 %v312, 1.0
    %v441 = vadd.f32 %v313, 1.0
    %v442 = vadd.f32 %v314, 1.0
    %v443 = vadd.f32 %v315, 1.0
    %v444 = vadd.f32 %v316, 1.0
    %v445 = vadd.f32 %v317, 1.0
    %v446 = vadd.f32 %v318, 1.0
    %v447 = vadd.f32 %v319, 1.0
    %v448 = vadd.f32 %v320, 1.0
    %v449 = vadd.f32 %v321, 1.0
    %v450 = vadd.f32 %v322, 1.0
    %v451 = vadd.f32 %v323, 1.0
    %v452 = vadd.f32 %v324, 1.0
    %v453 = vadd.f32 %v325, 1.0
    %v454 = vadd.f32 %v326, 1.0
    %v455 = vadd.f32 %v327, 1.0
    %v456 = vadd.f32 %v328, 1.0
    %v457 = vadd.f32 %v329, 1.0
    %v458 = vadd.f32 %v330, 1.0
    %v459 = vadd.f32 %v331, 1.0
    %v460 = vadd.f32 %v332, 1.0
    %v461 = vadd.f32 %v333, 1.0
    %v462 = vadd.f32 %v334, 1.0
    %v463 = vadd.f32 %v335, 1.0
    %v464 = vadd.f32 %v336, 1.0
    %v465 = vadd.f32 %v337, 1.0
    %v466 = vadd.f32 %v338, 1.0
    %v467 = vadd.f32 %v339, 1.0
    %v468 = vadd.f32 %v340, 1.0
    %v469 = vadd.f32 %v341, 1.0
    %v470 = vadd.f32 %v342, 1.0
    %v471 = vadd.f32 %v343, 1.0
    %v472 = vadd.f32 %v344, 1.0
    %v473 = vadd.f32 %v345, 1.0
    %v474 = vadd.f32 %v346, 1.0
    %v475 = vadd.f32 %v347, 1.0
    %v476 = vadd.f32 %v348, 1.0
    %v477 = vadd.f32 %v349, 1.0
    %v478 = vadd.f32 %v350, 1.0
    %v479 = vadd.f32 %v351, 1.0
    %v480 = vadd.f32 %v352, 1.0
    %v481 = vadd.f32 %v353, 1.0
    %v482 = vadd.f32 %v354, 1.0
    %v483 = vadd.f32 %v355, 1.0
    %v484 = vadd.f32 %v356, 1.0
    %v485 = vadd.f32 %v357, 1.0
    %v486 = vadd.f32 %v358, 1.0
    %v487 = vadd.f32 %v359, 1.0
    %v488 = vadd.f32 %v360, 1.0
    %v489 = vadd.f32 %v361, 1.0
    %v490 = vadd.f32 %v362, 1.0
    %v491 = vadd.f32 %v363, 1.0
    %v492 = vadd.f32 %v364, 1.0
    %v493 = vadd.f32 %v365, 1.0
    %v494 = vadd.f32 %v366, 1.0
    %v495 = vadd.f32 %v367, 1.0
    %v496 = vadd.f32 %v368, 1.0
    %v497 = vadd.f32 %v369, 1.0
    %v498 = vadd.f32 %v370, 1.0
    %v499 = vadd.f32 %v371, 1.0
    %v500 = vadd.f32 %v372, 1.0
    %v501 = vadd.f32 %v373, 1.0
    %v502 = vadd.f32 %v374, 1.0
    %v503 = vadd.f32 %v375, 1.0
    %v504 = vadd.f32 %v376, 1.0
    %v505 = vadd.f32 %v377, 1.0
    %v506 = vadd.f32 %v378, 1.0
    %v507 = vadd.f32 %v379, 1.0
    %v508 = vadd.f32 %v380, 1.0
    %v509 = vadd.f32 %v381, 1.0
    %v510 = vadd.f32 %v382, 1.0
    %v511 = vadd.f32 %v383, 1.0
    %v512 = vadd.f32 %v384, 1.0
    %v513 = vadd.f32 %v385, 1.0
    %v514 = vadd.f32 %v386, 1.0
    %v515 = vadd.f32 %v387, 1.0
    %v516 = vadd.f32 %v388, 1.0
    %v517 = vadd.f32 %v389, 1.0
    %v518 = vadd.f32 %v390, 1.0
    %v519 = vadd.f32 %v391, 1.0
    %v520 = vadd.f32 %v392, 1.0
    %v521 = vadd.f32 %v393, 1.0
    %v522 = vadd.f32 %v394, 1.0
    %v523 = vadd.f32 %v395, 1.0
    %v524 = vadd.f32 %v396, 1.0
    %v525 = vadd.f32 %v397, 1.0
    %v526 = vadd.f32 %v398, 1.0
    %v527 = vadd.f32 %v399, 1.0
    %v528 = vadd.f32 %v400, 1.0
    %v529 = vadd.f32 %v401, 1.0
    %v530 = vadd.f32 %v402, 1.0
    %v531 = vadd.f32 %v403, 1.0
    %v532 = vadd.f32 %v404, 1.0
    %v533 = vadd.f32 %v405, 1.0
    %v534 = vadd.f32 %v406, 1.0
    %v535 = vadd.f32 %v407, 1.0
    %v536 = vadd.f32 %v408, 1.0
    %v537 = vadd.f32 %v409, 1.0
    %v538 = vadd.f32 %v410, 1.0
    %v539 = vadd.f32 %v411, 1.0
    %v540 = vadd.f32 %v412, 1.0
    %v541 = vadd.f32 %v413, 1.0
    %v542 = vadd.f32 %v414, 1.0
    %v543 = vadd.f32 %v415, 1.0
    %v544 = vadd.f32 %v416, 1.0
    %v545 = vadd.f32 %v417, 1.0
    %v546 = vadd.f32 %v418, 1.0
    %v547 = vadd.f32 %v419, 1.0
    %v548 = vadd.f32 %v420, 1.0
    %v549 = vadd.f32 %v421, 1.0
    %v550 = vadd.f32 %v422, 1.0
    %v551 = vadd.f32 %v423, 1.0
    %v552 = vadd.f32 %v424, 1.0
    %v553 = vadd.f32 %v425, 1.0
    %v554 = vadd.f32 %v426, 1.0
    %v555 = vadd.f32 %v427, 1.0
    %v556 = vadd.f32 %v428, 1.0
    %v557 = vadd.f32 %v429, 1.0
    %v558 = vadd.f32 %v430, 1.0
    %v559 = vadd.f32 %v431, 1.0
    %v560 = vadd.f32 %v432, 1.0
    %v561 = vadd.f32 %v433, 1.0
    %v562 = vmax.f32 %v434, 0.0
    %v563 = vmax.f32 %v435, 0.0
    %v564 = vmax.f32 %v436, 0.0
    %v565 = vmax.f32 %v437, 0.0
    %v566 = vmax.f32 %v438, 0.0
    %v567 = vmax.f32 %v439, 0.0
    %v568 = vmax.f32 %v440, 0.0
    %v569 = vmax.f32 %v441, 0.0
    %v570 = vmax.f32 %v442, 0.0
    %v571 = vmax.f32 %v443, 0.0
    %v572 = vmax.f32 %v444, 0.0
    %v573 = vmax.f32 %v445, 0.0
    %v574 = vmax.f32 %v446, 0.0
    %v575 = vmax.f32 %v447, 0.0
    %v576 = vmax.f32 %v448, 0.0
    %v577 = vmax.f32 %v449, 0.0
    %v578 = vmax.f32 %v450, 0.0
    %v579 = vmax.f32 %v451, 0.0
    %v580 = vmax.f32 %v452, 0.0
    %v581 = vmax.f32 %v453, 0.0
    %v582 = vmax.f32 %v454, 0.0
    %v583 = vmax.f32 %v455, 0.0
    %v584 = vmax.f32 %v456, 0.0
    %v585 = vmax.f32 %v457, 0.0
    %v586 = vmax.f32 %v458, 0.0
    %v587 = vmax.f32 %v459, 0.0
    %v588 = vmax.f32 %v460, 0.0
    %v589 = vmax.f32 %v461, 0.0
    %v590 = vmax.f32 %v462, 0.0
    %v591 = vmax.f32 %v463, 0.0
    %v592 = vmax.f32 %v464, 0.0
    %v593 = vmax.f32 %v465, 0.0
    %v594 = vmax.f32 %v466, 0.0
    %v595 = vmax.f32 %v467, 0.0
    %v596 = vmax.f32 %v468, 0.0
    %v597 = vmax.f32 %v469, 0.0
    %v598 = vmax.f32 %v470, 0.0
    %v599 = vmax.f32 %v471, 0.0
    %v600 = vmax.f32 %v472, 0.0
    %v601 = vmax.f32 %v473, 0.0
    %v602 = vmax.f32 %v474, 0.0
    %v603 = vmax.f32 %v475, 0.0
    %v604 = vmax.f32 %v476, 0.0
    %v605 = vmax.f32 %v477, 0.0
    %v606 = vmax.f32 %v478, 0.0
    %v607 = vmax.f32 %v479, 0.0
    %v608 = vmax.f32 %v480, 0.0
    %v609 = vmax.f32 %v481, 0.0
    %v610 = vmax.f32 %v482, 0.0
    %v611 = vmax.f32 %v483, 0.0
    %v612 = vmax.f32 %v484, 0.0
    %v613 = vmax.f32 %v485, 0.0
    %v614 = vmax.f32 %v486, 0.0
    %v615 = vmax.f32 %v487, 0.0
    %v616 = vmax.f32 %v488, 0.0
    %v617 = vmax.f32 %v489, 0.0
    %v618 = vmax.f32 %v490, 0.0
    %v619 = vmax.f32 %v491, 0.0
    %v620 = vmax.f32 %v492, 0.0
    %v621 = vmax.f32 %v493, 0.0
    %v622 = vmax.f32 %v494, 0.0
    %v623 = vmax.f32 %v495, 0.0
    %v624 = vmax.f32 %v496, 0.0
    %v625 = vmax.f32 %v497, 0.0
    %v626 = vmax.f32 %v498, 0.0
    %v627 = vmax.f32 %v499, 0.0
    %v628 = vmax.f32 %v500, 0.0
    %v629 = vmax.f32 %v501, 0.0
    %v630 = vmax.f32 %v502, 0.0
    %v631 = vmax.f32 %v503, 0.0
    %v632 = vmax.f32 %v504, 0.0
    %v633 = vmax.f32 %v505, 0.0
    %v634 = vmax.f32 %v506, 0.0
    %v635 = vmax.f32 %v507, 0.0
    %v636 = vmax.f32 %v508, 0.0
    %v637 = vmax.f32 %v509, 0.0
    %v638 = vmax.f32 %v510, 0.0
    %v639 = vmax.f32 %v511, 0.0
    %v640 = vmax.f32 %v512, 0.0
    %v641 = vmax.f32 %v513, 0.0
    %v642 = vmax.f32 %v514, 0.0
    %v643 = vmax.f32 %v515, 0.0
    %v644 = vmax.f32 %v516, 0.0
    %v645 = vmax.f32 %v517, 0.0
    %v646 = vmax.f32 %v518, 0.0
    %v647 = vmax.f32 %v519, 0.0
    %v648 = vmax.f32 %v520, 0.0
    %v649 = vmax.f32 %v521, 0.0
    %v650 = vmax.f32 %v522, 0.0
    %v651 = vmax.f32 %v523, 0.0
    %v652 = vmax.f32 %v524, 0.0
    %v653 = vmax.f32 %v525, 0.0
    %v654 = vmax.f32 %v526, 0.0
    %v655 = vmax.f32 %v527, 0.0
    %v656 = vmax.f32 %v528, 0.0
    %v657 = vmax.f32 %v529, 0.0
    %v658 = vmax.f32 %v530, 0.0
    %v659 = vmax.f32 %v531, 0.0
    %v660 = vmax.f32 %v532, 0.0
    %v661 = vmax.f32 %v533, 0.0
    %v662 = vmax.f32 %v534, 0.0
    %v663 = vmax.f32 %v535, 0.0
    %v664 = vmax.f32 %v536, 0.0
    %v665 = vmax.f32 %v537, 0.0
    %v666 = vmax.f32 %v538, 0.0
    %v667 = vmax.f32 %v539, 0.0
    %v668 = vmax.f32 %v540, 0.0
    %v669 = vmax.f32 %v541, 0.0
    %v670 = vmax.f32 %v542, 0.0
    %v671 = vmax.f32 %v543, 0.0
    %v672 = vmax.f32 %v544, 0.0
    %v673 = vmax.f32 %v545, 0.0
    %v674 = vmax.f32 %v546, 0.0
    %v675 = vmax.f32 %v547, 0.0
    %v676 = vmax.f32 %v548, 0.0
    %v677 = vmax.f32 %v549, 0.0
    %v678 = vmax.f32 %v550, 0.0
    %v679 = vmax.f32 %v551, 0.0
    %v680 = vmax.f32 %v552, 0.0
    %v681 = vmax.f32 %v553, 0.0
    %v682 = vmax.f32 %v554, 0.0
    %v683 = vmax.f32 %v555, 0.0
    %v684 = vmax.f32 %v556, 0.0
    %v685 = vmax.f32 %v557, 0.0
    %v686 = vmax.f32 %v558, 0.0
    %v687 = vmax.f32 %v559, 0.0
    %v688 = vmax.f32 %v560, 0.0
    %v689 = vmax.f32 %v561, 0.0
    %v690 = vld [vmem:[#allocation2] sm:$0xff]
    %v691 = vld [vmem:[#allocation2 + $0x8] sm:$0xff]
    %v692 = vld [vmem:[#allocation2 + $0x10] sm:$0xff]
    %v693 = vld [vmem:[#allocation2 + $0x18] sm:$0xff]
    %v694 = vadd.f32 %v562, %v566
    %v695 = vadd.f32 %v694, %v570
    %v696 = vadd.f32 %v695, %v574
    %v697 = vadd.f32 %v696, %v578
    %v698 = vadd.f32 %v697, %v582
    %v699 = vadd.f32 %v698, %v586
    %v700 = vadd.f32 %v699, %v590
    %v701 = vadd.f32 %v700, %v594
    %v702 = vadd.f32 %v701, %v598
    %v703 = vadd.f32 %v702, %v602
    %v704 = vadd.f32 %v703, %v606
    %v705 = vadd.f32 %v704, %v610
    %v706 = vadd.f32 %v705, %v614
    %v707 = vadd.f32 %v706, %v618
    %v708 = vadd.f32 %v707, %v622
    %v709 = vadd.f32 %v708, %v626
    %v710 = vadd.f32 %v709, %v630
    %v711 = vadd.f32 %v710, %v634
    %v712 = vadd.f32 %v711, %v638
    %v713 = vadd.f32 %v712, %v642
    %v714 = vadd.f32 %v713, %v646
    %v715 = vadd.f32 %v714, %v650
    %v716 = vadd.f32 %v715, %v654
    %v717 = vadd.f32 %v716, %v658
    %v718 = vadd.f32 %v717, %v662
    %v719 = vadd.f32 %v718, %v666
    %v720 = vadd.f32 %v719, %v670
    %v721 = vadd.f32 %v720, %v674
    %v722 = vadd.f32 %v721, %v678
    %v723 = vadd.f32 %v722, %v682
    %v724 = vadd.f32 %v723, %v686
    %v725 = vadd.f32 %v563, %v567
    %v726 = vadd.f32 %v725, %v571
    %v727 = vadd.f32 %v726, %v575
    %v728 = vadd.f32 %v727, %v579
    %v729 = vadd.f32 %v728, %v583
    %v730 = vadd.f32 %v729, %v587
    %v731 = vadd.f32 %v730, %v591
    %v732 = vadd.f32 %v731, %v595
    %v733 = vadd.f32 %v732, %v599
    %v734 = vadd.f32 %v733, %v603
    %v735 = vadd.f32 %v734, %v607
    %v736 = vadd.f32 %v735, %v611
    %v737 = vadd.f32 %v736, %v615
    %v738 = vadd.f32 %v737, %v619
    %v739 = vadd.f32 %v738, %v623
    %v740 = vadd.f32 %v739, %v627
    %v741 = vadd.f32 %v740, %v631
    %v742 = vadd.f32 %v741, %v635
    %v743 = vadd.f32 %v742, %v639
    %v744 = vadd.f32 %v743, %v643
    %v745 = vadd.f32 %v744, %v647
    %v746 = vadd.f32 %v745, %v651
    %v747 = vadd.f32 %v746, %v655
    %v748 = vadd.f32 %v747, %v659
    %v749 = vadd.f32 %v748, %v663
    %v750 = vadd.f32 %v749, %v667
    %v751 = vadd.f32 %v750, %v671
    %v752 = vadd.f32 %v751, %v675
    %v753 = vadd.f32 %v752, %v679
    %v754 = vadd.f32 %v753, %v683
    %v755 = vadd.f32 %v754, %v687
    %v756 = vadd.f32 %v564, %v568
    %v757 = vadd.f32 %v756, %v572
    %v758 = vadd.f32 %v757, %v576
    %v759 = vadd.f32 %v758, %v580
    %v760 = vadd.f32 %v759, %v584
    %v761 = vadd.f32 %v760, %v588
    %v762 = vadd.f32 %v761, %v592
    %v763 = vadd.f32 %v762, %v596
    %v764 = vadd.f32 %v763, %v600
    %v765 = vadd.f32 %v764, %v604
    %v766 = vadd.f32 %v765, %v608
    %v767 = vadd.f32 %v766, %v612
    %v768 = vadd.f32 %v767, %v616
    %v769 = vadd.f32 %v768, %v620
    %v770 = vadd.f32 %v769, %v624
    %v771 = vadd.f32 %v770, %v628
    %v772 = vadd.f32 %v771, %v632
    %v773 = vadd.f32 %v772, %v636
    %v774 = vadd.f32 %v773, %v640
    %v775 = vadd.f32 %v774, %v644
    %v776 = vadd.f32 %v775, %v648
    %v777 = vadd.f32 %v776, %v652
    %v778 = vadd.f32 %v777, %v656
    %v779 = vadd.f32 %v778, %v660
    %v780 = vadd.f32 %v779, %v664
    %v781 = vadd.f32 %v780, %v668
    %v782 = vadd.f32 %v781, %v672
    %v783 = vadd.f32 %v782, %v676
    %v784 = vadd.f32 %v783, %v680
    %v785 = vadd.f32 %v784, %v684
    %v786 = vadd.f32 %v785, %v688
    %v787 = vadd.f32 %v565, %v569
    %v788 = vadd.f32 %v787, %v573
    %v789 = vadd.f32 %v788, %v577
    %v790 = vadd.f32 %v789, %v581
    %v791 = vadd.f32 %v790, %v585
    %v792 = vadd.f32 %v791, %v589
    %v793 = vadd.f32 %v792, %v593
    %v794 = vadd.f32 %v793, %v597
    %v795 = vadd.f32 %v794, %v601
    %v796 = vadd.f32 %v795, %v605
    %v797 = vadd.f32 %v796, %v609
    %v798 = vadd.f32 %v797, %v613
    %v799 = vadd.f32 %v798, %v617
    %v800 = vadd.f32 %v799, %v621
    %v801 = vadd.f32 %v800, %v625
    %v802 = vadd.f32 %v801, %v629
    %v803 = vadd.f32 %v802, %v633
    %v804 = vadd.f32 %v803, %v637
    %v805 = vadd.f32 %v804, %v641
    %v806 = vadd.f32 %v805, %v645
    %v807 = vadd.f32 %v806, %v649
    %v808 = vadd.f32 %v807, %v653
    %v809 = vadd.f32 %v808, %v657
    %v810 = vadd.f32 %v809, %v661
    %v811 = vadd.f32 %v810, %v665
    %v812 = vadd.f32 %v811, %v669
    %v813 = vadd.f32 %v812, %v673
    %v814 = vadd.f32 %v813, %v677
    %v815 = vadd.f32 %v814, %v681
    %v816 = vadd.f32 %v815, %v685
    %v817 = vadd.f32 %v816, %v689
    %v818 = vadd.f32 %v690, %v724
    %v819 = vadd.f32 %v691, %v755
    %v820 = vadd.f32 %v692, %v786
    %v821 = vadd.f32 %v693, %v817
    %822 = vst [vmem:[#allocation2] sm:$0xff] %v818
    %823 = vst [vmem:[#allocation2 + $0x8] sm:$0xff] %v819
    %824 = vst [vmem:[#allocation2 + $0x10] sm:$0xff] %v820
    %825 = vst [vmem:[#allocation2 + $0x18] sm:$0xff] %v821
    // Predicated region
    $region22: #{tpu_custom_call.1} parent=1 // pred_check
      _
    $region23: #{tpu_custom_call.1} parent=1 // pred_check_branch
      %827 = sbr.rel (%p42) target = $region25
    $region24: #{tpu_custom_call.1} parent=1 // pred_region
      %v828 = vld [vmem:[#allocation2] sm:$0xff]
      %v829 = vld [vmem:[#allocation2 + $0x8] sm:$0xff]
      %v830 = vld [vmem:[#allocation2 + $0x10] sm:$0xff]
      %v831 = vld [vmem:[#allocation2 + $0x18] sm:$0xff]
      %v832 = vadd.f32 %v828, %v829
      %v833 = vadd.f32 %v832, %v830
      %v834 = vadd.f32 %v833, %v831
      %835 = vadd.xlane.f32.xlu0 %v834
      %v836 = vpop.xlane.xlu0 %835
      %v837 = vrot.slane %v836, 4
      %v838 = vadd.f32 %v836, %v837
      %v839 = vrot.slane %v838, 2
      %v840 = vadd.f32 %v838, %v839
      %v841 = vrot.slane %v840, 1
      %v842 = vadd.f32 %v840, %v841
      %s843 = vtos %v842
      %v844 = vstv %s843
      %v845 = vmul.f32 %v844, 7.6293945e-06
      %vm846 = vcmask 0
      %847 = vst.msk [vmem:[#allocation8] sm:$0x1] %vm846, %v845
    $region25: #{tpu_custom_call.1} parent=1 // pred_fallthru
      _
    // Predicated region
    $region26: #{tpu_custom_call.1} parent=1 // pred_check
      _
    $region27: #{tpu_custom_call.1} parent=1 // pred_check_branch
      %849 = sbr.rel (0) target = $region29
    $region28: #{tpu_custom_call.1} parent=1 // pred_region
      %s851 = ssub.s32 16, 16
      %852 = vsyncadd [#allocation5], %s851
      %s854 = sshll.u32 [#allocation8], 4
      %s855 = int_to_ptr.vmem [resolvable:$true] %s854
      %857 = dma.vmem_to_hbm [thread:$0]  %s855, 16, %s2, [#allocation5]
    $region29: #{tpu_custom_call.1} parent=1 // pred_fallthru
      _
    // Predicated region
    $region30: #{tpu_custom_call.1} parent=1 // pred_check
      _
    $region31: #{tpu_custom_call.1} parent=1 // pred_check_branch
      %859 = sbr.rel (0) target = $region33
    $region32: #{tpu_custom_call.1} parent=1 // pred_region
      %860 = dma.done [#allocation5], 16
    $region33: #{tpu_custom_call.1} parent=1 // pred_fallthru
      _
    %861 = vsyncpa [#allocation4], 1
    %862 = vsyncpa [#allocation7], 1
    %863 = vsyncpa [#allocation5], 1

</llo_original>
